<compile_context>
chip_gen: v7x
topology: tpu7x:2x2x1
jax: 0.10.0
libtpu: 0.0.40
codegen_flags: <defaults>
</compile_context>

<pallas_src>
import functools

import jax
import jax.numpy as jnp
from jax.experimental import pallas as pl
from jax.experimental.pallas import tpu as pltpu


def _round_up(x, m):
    return ((x + m - 1) // m) * m


def _seg_loss_kernel(gamma, m_valid, n_inner, tile, masked, has_core_axis,
                     x_ref, t_ref, w_ref,
                     nll_ref, wsum_ref, foc_ref,
                     acc_nll, acc_w, acc_foc):
    """Per-tile: flip the (tile, C) logits block to lane-dense (C, tile),
    log-softmax over the class (sublane) axis, gather true-class values via
    one-hot, accumulate per-point partials into vector accumulators; the
    cross-lane reduce to scalars happens only on the LAST grid step."""
    if has_core_axis:
        c = pl.program_id(0)            # core-split axis ("parallel")
        i = pl.program_id(1)            # reduction axis  ("arbitrary")
        n_i = pl.num_programs(1)
    else:
        c = 0
        i = pl.program_id(0)
        n_i = pl.num_programs(0)

    @pl.when(i == 0)
    def _():
        acc_nll[...] = jnp.zeros_like(acc_nll)
        acc_w[...] = jnp.zeros_like(acc_w)
        acc_foc[...] = jnp.zeros_like(acc_foc)

    # native-dtype (tile, C) block -> f32 -> lane-dense (C, tile) (XLU flip)
    x = jnp.transpose(x_ref[...].astype(jnp.float32))      # (C, tile)
    t = t_ref[...].astype(jnp.int32)                        # (1, tile)
    w = w_ref[...].astype(jnp.float32)                      # (C, 1)

    num_classes = x.shape[0]
    # tiny (C, 1) class-id column; the compare broadcasts against (1, T)
    # targets, so no extra (C, T) iota is materialized per step.
    cls = jax.lax.broadcasted_iota(jnp.int32, (num_classes, 1), 0)
    onehot = (cls == t).astype(jnp.float32)                 # (C, tile)

    # numerically-stable log-softmax pieces (reductions over the sublane axis)
    m = jnp.max(x, axis=0, keepdims=True)                   # (1, tile)
    e = jnp.exp(x - m)                                      # (C, tile)
    denom = jnp.sum(e, axis=0, keepdims=True)               # (1, tile)
    lse = m + jnp.log(denom)
    logit_t = jnp.sum(x * onehot, axis=0, keepdims=True)    # true-class logit
    wt = jnp.sum(w * onehot, axis=0, keepdims=True)         # per-point class weight

    nll = lse - logit_t                                     # per-point CE

    g = float(gamma)
    if g == 0.0:
        foc = jnp.ones_like(nll)
    else:
        # p_t from the already-computed numerator `e` (drops one EUP exp per
        # point); approx=False keeps f32 accuracy - the EUP win is the removed
        # exp, the reciprocal's Newton refine runs on the idle VPU.
        e_t = jnp.sum(e * onehot, axis=0, keepdims=True)
        p_t = e_t * pl.reciprocal(denom, approx=False)
        base = jnp.maximum(1.0 - p_t, 0.0)
        if g.is_integer() and 0 < g <= 8:
            foc = base ** int(g)                            # integer_pow -> VPU multiplies
        else:
            foc = base ** g

    nll_c = wt * nll
    w_c = wt
    foc_c = foc
    if masked:
        col = jax.lax.broadcasted_iota(jnp.int32, (1, tile), 1)
        gidx = (c * n_inner + i) * tile + col               # global point index
        valid = gidx < m_valid
        # select (not multiply): out-of-bounds tail lanes hold unspecified data,
        # whose exp/log may be Inf/NaN; 0*NaN would poison the accumulators.
        nll_c = jnp.where(valid, nll_c, 0.0)
        w_c = jnp.where(valid, w_c, 0.0)
        foc_c = jnp.where(valid, foc_c, 0.0)

    # vector accumulation (lane-dense adds); scalar reduce deferred to last step
    acc_nll[...] += nll_c
    acc_w[...] += w_c
    acc_foc[...] += foc_c

    @pl.when(i == n_i - 1)
    def _():
        lane = jax.lax.broadcasted_iota(jnp.int32, (1, 128), 1)
        nll_ref[...] = jnp.where(lane == 0, jnp.sum(acc_nll[...]), 0.0)
        wsum_ref[...] = jnp.where(lane == 0, jnp.sum(acc_w[...]), 0.0)
        foc_ref[...] = jnp.where(lane == 0, jnp.sum(acc_foc[...]), 0.0)


def pointnet_seg_loss(predictions, targets, pred_choice=None, *, alpha=None,
                      gamma=0.0, size_average=True, dice=False,
                      tile_m=16384, core_split=None):
    """predictions: (B, N, C) float logits (any float dtype); targets: (B, N) int class ids."""
    B, N, C = predictions.shape
    M = B * N

    # --- free reshapes only: no transpose, no pad, no dtype copy in the wrapper
    x2 = predictions.reshape(M, C)                 # (M, C), native dtype
    t2 = targets.reshape(1, M)                     # (1, M), native int dtype

    m_rows = M
    if m_rows < 128:                               # degenerate tiny input only
        pad = 128 - m_rows
        x2 = jnp.pad(x2, ((0, pad), (0, 0)))
        t2 = jnp.pad(t2, ((0, 0), (0, pad)))
        m_rows = 128

    # class weights (torch scalar-alpha -> [alpha, 1 - alpha], assumes C == 2)
    if alpha is None:
        w = jnp.ones((C, 1), jnp.float32)
    else:
        a = jnp.asarray(alpha, jnp.float32)
        if a.ndim == 0:
            a = jnp.stack([a, 1.0 - a])
        w = a.reshape(-1, 1)
        assert w.shape[0] == C, "alpha length must match number of classes"

    # --- per-generation knobs ------------------------------------------------
    is_v7x = False
    try:
        is_v7x = "v7" in jax.devices()[0].device_kind.lower()
    except Exception:
        pass
    if core_split is None:
        core_split = 2 if is_v7x else 1            # 2 TensorCores only on v7x
    core_split = max(1, int(core_split))

    # --- tiling: biggest tile that never exceeds the array's point dim --------
    tile = max(128, min(_round_up(int(tile_m), 128), (m_rows // 128) * 128))
    n_blocks = -(-m_rows // tile)                  # ceil
    if n_blocks < core_split:
        core_split = 1
    n_inner = -(-n_blocks // core_split)
    coverage = core_split * n_inner * tile
    masked = coverage != M                         # ragged tail (or tiny pad)
    last_block = n_blocks - 1

    kernel = functools.partial(_seg_loss_kernel, float(gamma), M, n_inner, tile,
                               masked, core_split > 1)

    # logits in_spec: 3-deep pipelining only on v7x (2 TCs contend for HBM)
    buf = dict(pipeline_mode=pl.Buffered(3)) if is_v7x else {}
    if core_split == 1:
        grid = (n_inner,)
        dim_sem = ("arbitrary",)
        x_spec = pl.BlockSpec((tile, C), lambda i: (i, 0), **buf)
        t_spec = pl.BlockSpec((1, tile), lambda i: (0, i))
        w_spec = pl.BlockSpec((C, 1), lambda i: (0, 0))
        o_spec = pl.BlockSpec((1, 128), lambda i: (0, 0))
    else:
        grid = (core_split, n_inner)
        dim_sem = ("parallel", "arbitrary")

        # clamp: a core's trailing block may start past the end of the array;
        # re-read the last real block instead (its contribution is masked out
        # by the global-index test in the kernel).
        def blk(c, i):
            return jnp.minimum(c * n_inner + i, last_block)

        x_spec = pl.BlockSpec((tile, C), lambda c, i: (blk(c, i), 0), **buf)
        t_spec = pl.BlockSpec((1, tile), lambda c, i: (0, blk(c, i)))
        w_spec = pl.BlockSpec((C, 1), lambda c, i: (0, 0))
        o_spec = pl.BlockSpec((1, 128), lambda c, i: (0, c))

    out_row = jax.ShapeDtypeStruct((1, core_split * 128), jnp.float32)
    nll_sum, wsum, foc_sum = pl.pallas_call(
        kernel,
        out_shape=(out_row, out_row, out_row),
        grid_spec=pltpu.PrefetchScalarGridSpec(
            num_scalar_prefetch=0,
            grid=grid,
            in_specs=[x_spec, t_spec, w_spec],
            out_specs=(o_spec, o_spec, o_spec),
            scratch_shapes=[pltpu.VMEM((1, tile), jnp.float32)] * 3),
        compiler_params=pltpu.CompilerParams(
            dimension_semantics=dim_sem,
            vmem_limit_bytes=48 * 1024 * 1024),
    )(x2, t2, w)

    # weighted-mean CE (PyTorch CrossEntropyLoss with `weight` divides by sum of weights)
    ce_loss = jnp.sum(nll_sum) / jnp.sum(wsum)
    foc_total = jnp.sum(foc_sum)
    loss = (foc_total / M) * ce_loss if size_average else foc_total * ce_loss

    if dice:
        # TODO(synk): dice_loss uses data-dependent torch.unique over labels; not
        # expressible as a static-shape Pallas kernel (module default is dice=False).
        raise NotImplementedError("dice=True path not implemented")
    return loss


def _reference_loss(x, t, w, gamma, size_average):
    """Pure-JAX reference mirroring the PyTorch forward, for a sanity check."""
    x = x.astype(jnp.float32)
    logp = jax.nn.log_softmax(x, axis=-1)
    nll = -jnp.take_along_axis(logp, t[:, None], axis=1)[:, 0]
    wt = w[t]
    ce = jnp.sum(wt * nll) / jnp.sum(wt)
    pn = jnp.take_along_axis(jnp.exp(logp), t[:, None], axis=1)[:, 0]
    loss = (1.0 - pn) ** gamma * ce
    return loss.mean() if size_average else loss.sum()


if __name__ == "__main__":
    key = jax.random.PRNGKey(0)
    k1, k2, k3, k4 = jax.random.split(key, 4)

    # --- main small shape: B=2 clouds, N=72 points, C=8 classes (ragged tail) ---
    B, N, C = 2, 72, 8
    preds = jax.random.normal(k1, (B, N, C), dtype=jnp.float32)
    tgts = jax.random.randint(k2, (B, N), 0, C, dtype=jnp.int32)
    alpha = [0.5 + 0.05 * i for i in range(C)]
    w_vec = jnp.asarray(alpha, jnp.float32)

    loss = pointnet_seg_loss(preds, tgts, alpha=alpha, gamma=2.0)
    loss = jax.block_until_ready(loss)
    ref = _reference_loss(preds.reshape(-1, C), tgts.reshape(-1), w_vec, 2.0, True)
    assert jnp.allclose(loss, ref, rtol=1e-4, atol=1e-5), (loss, ref)

    # --- multi-step accumulation + partial edge block (tile < M) ---
    B2, N2 = 2, 400
    preds2 = jax.random.normal(k3, (B2, N2, C), dtype=jnp.float32)
    tgts2 = jax.random.randint(k4, (B2, N2), 0, C, dtype=jnp.int32)
    loss2 = pointnet_seg_loss(preds2, tgts2, alpha=alpha, gamma=2.0, tile_m=128)
    loss2 = jax.block_until_ready(loss2)
    ref2 = _reference_loss(preds2.reshape(-1, C), tgts2.reshape(-1), w_vec, 2.0, True)
    assert jnp.allclose(loss2, ref2, rtol=1e-4, atol=1e-5), (loss2, ref2)

    # --- explicit 2-way core split (megacore layout; runs serially on 1-TC chips) ---
    loss3 = pointnet_seg_loss(preds2, tgts2, alpha=alpha, gamma=2.0,
                              tile_m=128, core_split=2)
    loss3 = jax.block_until_ready(loss3)
    assert jnp.allclose(loss3, ref2, rtol=1e-4, atol=1e-5), (loss3, ref2)

    # --- bf16 logits ingested natively, gamma=0, sum reduction, no alpha ---
    preds_bf16 = preds2.astype(jnp.bfloat16)
    loss4 = pointnet_seg_loss(preds_bf16, tgts2, gamma=0.0, size_average=False)
    loss4 = jax.block_until_ready(loss4)
    ref4 = _reference_loss(preds_bf16.astype(jnp.float32).reshape(-1, C),
                           tgts2.reshape(-1), jnp.ones((C,), jnp.float32), 0.0, False)
    assert jnp.allclose(loss4, ref4, rtol=1e-3, atol=1e-3), (loss4, ref4)

    print("KERNEL_OK")
</pallas_src>

<mosaic_0001>
module attributes {stable_mosaic.version = 11 : i64} {
  func.func @_seg_loss_kernel(%arg0: i32, %arg1: memref<128x8xf32, #tpu.memory_space<vmem>>, %arg2: memref<1x128xi32, #tpu.memory_space<vmem>>, %arg3: memref<8x1xf32, #tpu.memory_space<vmem>>, %arg4: memref<1x128xf32, #tpu.memory_space<vmem>>, %arg5: memref<1x128xf32, #tpu.memory_space<vmem>>, %arg6: memref<1x128xf32, #tpu.memory_space<vmem>>, %arg7: memref<1x128xf32, #tpu.memory_space<vmem>>, %arg8: memref<1x128xf32, #tpu.memory_space<vmem>>, %arg9: memref<1x128xf32, #tpu.memory_space<vmem>>) attributes {dimension_semantics = [#tpu.dimension_semantics<arbitrary>], iteration_bounds = array<i64: 2>, scalar_prefetch = 0 : i64, scratch_operands = 3 : i64, tpu.core_type = #tpu.core_type<tc>, window_params = [{transform_indices = @transform_0, window_bounds = array<i64: 128, 8>}, {transform_indices = @transform_1, window_bounds = array<i64: 1, 128>}, {pipeline_mode = #tpu.pipeline_mode<synchronous>, transform_indices = @transform_2, window_bounds = array<i64: 8, 1>}, {pipeline_mode = #tpu.pipeline_mode<synchronous>, transform_indices = @transform_3, window_bounds = array<i64: 1, 128>}, {pipeline_mode = #tpu.pipeline_mode<synchronous>, transform_indices = @transform_4, window_bounds = array<i64: 1, 128>}, {pipeline_mode = #tpu.pipeline_mode<synchronous>, transform_indices = @transform_5, window_bounds = array<i64: 1, 128>}]} {
    %c0_i32 = arith.constant 0 : i32
    %0 = arith.cmpi eq, %arg0, %c0_i32 : i32
    %1 = arith.extui %0 : i1 to i32
    %c0_i32_0 = arith.constant 0 : i32
    %2 = arith.cmpi ne, %1, %c0_i32_0 : i32
    scf.if %2 {
      %cst_29 = arith.constant 0.000000e+00 : f32
      %66 = vector.broadcast %cst_29 : f32 to vector<1x128xf32>
      %c0_30 = arith.constant 0 : index
      %c0_31 = arith.constant 0 : index
      %67 = vector.load %arg7[%c0_30, %c0_31] : memref<1x128xf32, #tpu.memory_space<vmem>>, vector<1x128xf32>
      tpu.vector_store %arg7[%c0_30, %c0_31], %66 {strides = array<i32>} : memref<1x128xf32, #tpu.memory_space<vmem>>, vector<1x128xf32>,
      %cst_32 = arith.constant 0.000000e+00 : f32
      %68 = vector.broadcast %cst_32 : f32 to vector<1x128xf32>
      %c0_33 = arith.constant 0 : index
      %c0_34 = arith.constant 0 : index
      %69 = vector.load %arg8[%c0_33, %c0_34] : memref<1x128xf32, #tpu.memory_space<vmem>>, vector<1x128xf32>
      tpu.vector_store %arg8[%c0_33, %c0_34], %68 {strides = array<i32>} : memref<1x128xf32, #tpu.memory_space<vmem>>, vector<1x128xf32>,
      %cst_35 = arith.constant 0.000000e+00 : f32
      %70 = vector.broadcast %cst_35 : f32 to vector<1x128xf32>
      %c0_36 = arith.constant 0 : index
      %c0_37 = arith.constant 0 : index
      %71 = vector.load %arg9[%c0_36, %c0_37] : memref<1x128xf32, #tpu.memory_space<vmem>>, vector<1x128xf32>
      tpu.vector_store %arg9[%c0_36, %c0_37], %70 {strides = array<i32>} : memref<1x128xf32, #tpu.memory_space<vmem>>, vector<1x128xf32>,
    } else {
    }
    %c0 = arith.constant 0 : index
    %c0_1 = arith.constant 0 : index
    %3 = vector.load %arg1[%c0, %c0_1] : memref<128x8xf32, #tpu.memory_space<vmem>>, vector<128x8xf32>
    %4 = tpu.transpose %3, [1, 0] : vector<128x8xf32> -> vector<8x128xf32>
    %c0_2 = arith.constant 0 : index
    %c0_3 = arith.constant 0 : index
    %5 = vector.load %arg2[%c0_2, %c0_3] : memref<1x128xi32, #tpu.memory_space<vmem>>, vector<1x128xi32>
    %c0_4 = arith.constant 0 : index
    %c0_5 = arith.constant 0 : index
    %6 = vector.load %arg3[%c0_4, %c0_5] : memref<8x1xf32, #tpu.memory_space<vmem>>, vector<8x1xf32>
    %7 = tpu.iota {dimensions = array<i32: 0>} : vector<8x1xi32>
    %8 = vector.broadcast %7 : vector<8x1xi32> to vector<8x128xi32>
    %9 = vector.broadcast %5 : vector<1x128xi32> to vector<8x128xi32>
    %10 = arith.cmpi eq, %8, %9 : vector<8x128xi32>
    %11 = arith.extui %10 : vector<8x128xi1> to vector<8x128xi32>
    %12 = arith.sitofp %11 : vector<8x128xi32> to vector<8x128xf32>
    %cst = arith.constant dense<0xFF800000> : vector<128xf32>
    %13 = vector.multi_reduction <maximumf>, %4, %cst [0] : vector<8x128xf32> to vector<128xf32>
    %14 = vector.shape_cast %13 : vector<128xf32> to vector<1x128xf32>
    %15 = vector.broadcast %14 : vector<1x128xf32> to vector<8x128xf32>
    %16 = arith.subf %4, %15 : vector<8x128xf32>
    %17 = math.exp %16 : vector<8x128xf32>
    %cst_6 = arith.constant dense<0.000000e+00> : vector<128xf32>
    %18 = vector.multi_reduction <add>, %17, %cst_6 [0] : vector<8x128xf32> to vector<128xf32>
    %19 = vector.shape_cast %18 : vector<128xf32> to vector<1x128xf32>
    %20 = math.log %19 : vector<1x128xf32>
    %21 = arith.addf %14, %20 : vector<1x128xf32>
    %22 = arith.mulf %4, %12 : vector<8x128xf32>
    %cst_7 = arith.constant dense<0.000000e+00> : vector<128xf32>
    %23 = vector.multi_reduction <add>, %22, %cst_7 [0] : vector<8x128xf32> to vector<128xf32>
    %24 = vector.shape_cast %23 : vector<128xf32> to vector<1x128xf32>
    %25 = vector.broadcast %6 : vector<8x1xf32> to vector<8x128xf32>
    %26 = arith.mulf %25, %12 : vector<8x128xf32>
    %cst_8 = arith.constant dense<0.000000e+00> : vector<128xf32>
    %27 = vector.multi_reduction <add>, %26, %cst_8 [0] : vector<8x128xf32> to vector<128xf32>
    %28 = vector.shape_cast %27 : vector<128xf32> to vector<1x128xf32>
    %29 = arith.subf %21, %24 : vector<1x128xf32>
    %30 = arith.mulf %17, %12 : vector<8x128xf32>
    %cst_9 = arith.constant dense<0.000000e+00> : vector<128xf32>
    %31 = vector.multi_reduction <add>, %30, %cst_9 [0] : vector<8x128xf32> to vector<128xf32>
    %32 = vector.shape_cast %31 : vector<128xf32> to vector<1x128xf32>
    %33 = tpu.reciprocal %19 : vector<1x128xf32> -> vector<1x128xf32>
    %34 = arith.mulf %32, %33 : vector<1x128xf32>
    %cst_10 = arith.constant 1.000000e+00 : f32
    %35 = vector.broadcast %cst_10 : f32 to vector<1x128xf32>
    %36 = arith.subf %35, %34 : vector<1x128xf32>
    %cst_11 = arith.constant 0.000000e+00 : f32
    %37 = vector.broadcast %cst_11 : f32 to vector<1x128xf32>
    %38 = arith.maximumf %36, %37 : vector<1x128xf32>
    %39 = arith.mulf %38, %38 : vector<1x128xf32>
    %40 = arith.mulf %28, %29 : vector<1x128xf32>
    %41 = tpu.iota {dimensions = array<i32: 1>} : vector<1x128xi32>
    %c0_i32_12 = arith.constant 0 : i32
    %42 = arith.addi %c0_i32_12, %arg0 : i32
    %c128_i32 = arith.constant 128 : i32
    %43 = arith.muli %42, %c128_i32 : i32
    %44 = vector.broadcast %43 : i32 to vector<1x128xi32>
    %45 = arith.addi %44, %41 : vector<1x128xi32>
    %c144_i32 = arith.constant 144 : i32
    %46 = vector.broadcast %c144_i32 : i32 to vector<1x128xi32>
    %47 = arith.cmpi slt, %45, %46 : vector<1x128xi32>
    %cst_13 = arith.constant 0.000000e+00 : f32
    %48 = vector.broadcast %cst_13 : f32 to vector<1x128xf32>
    %49 = arith.select %47, %40, %48 : vector<1x128xi1>, vector<1x128xf32>
    %cst_14 = arith.constant 0.000000e+00 : f32
    %50 = vector.broadcast %cst_14 : f32 to vector<1x128xf32>
    %51 = arith.select %47, %28, %50 : vector<1x128xi1>, vector<1x128xf32>
    %cst_15 = arith.constant 0.000000e+00 : f32
    %52 = vector.broadcast %cst_15 : f32 to vector<1x128xf32>
    %53 = arith.select %47, %39, %52 : vector<1x128xi1>, vector<1x128xf32>
    %c0_16 = arith.constant 0 : index
    %c0_17 = arith.constant 0 : index
    %54 = vector.load %arg7[%c0_16, %c0_17] : memref<1x128xf32, #tpu.memory_space<vmem>>, vector<1x128xf32>
    %55 = arith.addf %54, %49 : vector<1x128xf32>
    %c0_18 = arith.constant 0 : index
    %c0_19 = arith.constant 0 : index
    %56 = vector.load %arg7[%c0_18, %c0_19] : memref<1x128xf32, #tpu.memory_space<vmem>>, vector<1x128xf32>
    tpu.vector_store %arg7[%c0_18, %c0_19], %55 {strides = array<i32>} : memref<1x128xf32, #tpu.memory_space<vmem>>, vector<1x128xf32>,
    %c0_20 = arith.constant 0 : index
    %c0_21 = arith.constant 0 : index
    %57 = vector.load %arg8[%c0_20, %c0_21] : memref<1x128xf32, #tpu.memory_space<vmem>>, vector<1x128xf32>
    %58 = arith.addf %57, %51 : vector<1x128xf32>
    %c0_22 = arith.constant 0 : index
    %c0_23 = arith.constant 0 : index
    %59 = vector.load %arg8[%c0_22, %c0_23] : memref<1x128xf32, #tpu.memory_space<vmem>>, vector<1x128xf32>
    tpu.vector_store %arg8[%c0_22, %c0_23], %58 {strides = array<i32>} : memref<1x128xf32, #tpu.memory_space<vmem>>, vector<1x128xf32>,
    %c0_24 = arith.constant 0 : index
    %c0_25 = arith.constant 0 : index
    %60 = vector.load %arg9[%c0_24, %c0_25] : memref<1x128xf32, #tpu.memory_space<vmem>>, vector<1x128xf32>
    %61 = arith.addf %60, %53 : vector<1x128xf32>
    %c0_26 = arith.constant 0 : index
    %c0_27 = arith.constant 0 : index
    %62 = vector.load %arg9[%c0_26, %c0_27] : memref<1x128xf32, #tpu.memory_space<vmem>>, vector<1x128xf32>
    tpu.vector_store %arg9[%c0_26, %c0_27], %61 {strides = array<i32>} : memref<1x128xf32, #tpu.memory_space<vmem>>, vector<1x128xf32>,
    %c1_i32 = arith.constant 1 : i32
    %63 = arith.cmpi eq, %arg0, %c1_i32 : i32
    %64 = arith.extui %63 : i1 to i32
    %c0_i32_28 = arith.constant 0 : i32
    %65 = arith.cmpi ne, %64, %c0_i32_28 : i32
    scf.if %65 {
      %66 = tpu.iota {dimensions = array<i32: 1>} : vector<1x128xi32>
      %c0_i32_29 = arith.constant 0 : i32
      %67 = vector.broadcast %c0_i32_29 : i32 to vector<1x128xi32>
      %68 = arith.cmpi eq, %66, %67 : vector<1x128xi32>
      %c0_30 = arith.constant 0 : index
      %c0_31 = arith.constant 0 : index
      %69 = vector.load %arg7[%c0_30, %c0_31] : memref<1x128xf32, #tpu.memory_space<vmem>>, vector<1x128xf32>
      %70 = vector.shape_cast %69 : vector<1x128xf32> to vector<1x1x128xf32>
      %cst_32 = arith.constant dense<0.000000e+00> : vector<1xf32>
      %71 = vector.multi_reduction <add>, %70, %cst_32 [1, 2] : vector<1x1x128xf32> to vector<1xf32>
      %72 = vector.shape_cast %71 : vector<1xf32> to vector<1x1x1xf32>
      %73 = vector.extract %72[0, 0, 0] : f32 from vector<1x1x1xf32>
      %cst_33 = arith.constant 0.000000e+00 : f32
      %74 = vector.broadcast %73 : f32 to vector<1x128xf32>
      %75 = vector.broadcast %cst_33 : f32 to vector<1x128xf32>
      %76 = arith.select %68, %74, %75 : vector<1x128xi1>, vector<1x128xf32>
      %c0_34 = arith.constant 0 : index
      %c0_35 = arith.constant 0 : index
      %77 = vector.load %arg4[%c0_34, %c0_35] : memref<1x128xf32, #tpu.memory_space<vmem>>, vector<1x128xf32>
      tpu.vector_store %arg4[%c0_34, %c0_35], %76 {strides = array<i32>} : memref<1x128xf32, #tpu.memory_space<vmem>>, vector<1x128xf32>,
      %c0_i32_36 = arith.constant 0 : i32
      %78 = vector.broadcast %c0_i32_36 : i32 to vector<1x128xi32>
      %79 = arith.cmpi eq, %66, %78 : vector<1x128xi32>
      %c0_37 = arith.constant 0 : index
      %c0_38 = arith.constant 0 : index
      %80 = vector.load %arg8[%c0_37, %c0_38] : memref<1x128xf32, #tpu.memory_space<vmem>>, vector<1x128xf32>
      %81 = vector.shape_cast %80 : vector<1x128xf32> to vector<1x1x128xf32>
      %cst_39 = arith.constant dense<0.000000e+00> : vector<1xf32>
      %82 = vector.multi_reduction <add>, %81, %cst_39 [1, 2] : vector<1x1x128xf32> to vector<1xf32>
      %83 = vector.shape_cast %82 : vector<1xf32> to vector<1x1x1xf32>
      %84 = vector.extract %83[0, 0, 0] : f32 from vector<1x1x1xf32>
      %cst_40 = arith.constant 0.000000e+00 : f32
      %85 = vector.broadcast %84 : f32 to vector<1x128xf32>
      %86 = vector.broadcast %cst_40 : f32 to vector<1x128xf32>
      %87 = arith.select %79, %85, %86 : vector<1x128xi1>, vector<1x128xf32>
      %c0_41 = arith.constant 0 : index
      %c0_42 = arith.constant 0 : index
      %88 = vector.load %arg5[%c0_41, %c0_42] : memref<1x128xf32, #tpu.memory_space<vmem>>, vector<1x128xf32>
      tpu.vector_store %arg5[%c0_41, %c0_42], %87 {strides = array<i32>} : memref<1x128xf32, #tpu.memory_space<vmem>>, vector<1x128xf32>,
      %c0_i32_43 = arith.constant 0 : i32
      %89 = vector.broadcast %c0_i32_43 : i32 to vector<1x128xi32>
      %90 = arith.cmpi eq, %66, %89 : vector<1x128xi32>
      %c0_44 = arith.constant 0 : index
      %c0_45 = arith.constant 0 : index
      %91 = vector.load %arg9[%c0_44, %c0_45] : memref<1x128xf32, #tpu.memory_space<vmem>>, vector<1x128xf32>
      %92 = vector.shape_cast %91 : vector<1x128xf32> to vector<1x1x128xf32>
      %cst_46 = arith.constant dense<0.000000e+00> : vector<1xf32>
      %93 = vector.multi_reduction <add>, %92, %cst_46 [1, 2] : vector<1x1x128xf32> to vector<1xf32>
      %94 = vector.shape_cast %93 : vector<1xf32> to vector<1x1x1xf32>
      %95 = vector.extract %94[0, 0, 0] : f32 from vector<1x1x1xf32>
      %cst_47 = arith.constant 0.000000e+00 : f32
      %96 = vector.broadcast %95 : f32 to vector<1x128xf32>
      %97 = vector.broadcast %cst_47 : f32 to vector<1x128xf32>
      %98 = arith.select %90, %96, %97 : vector<1x128xi1>, vector<1x128xf32>
      %c0_48 = arith.constant 0 : index
      %c0_49 = arith.constant 0 : index
      %99 = vector.load %arg6[%c0_48, %c0_49] : memref<1x128xf32, #tpu.memory_space<vmem>>, vector<1x128xf32>
      tpu.vector_store %arg6[%c0_48, %c0_49], %98 {strides = array<i32>} : memref<1x128xf32, #tpu.memory_space<vmem>>, vector<1x128xf32>,
    } else {
    }
    return
  }
  func.func @transform_0(%arg0: i32) -> (i32, i32) {
    %c0_i32 = arith.constant 0 : i32
    %c0_i32_0 = arith.constant 0 : i32
    return %arg0, %c0_i32 : i32, i32
  }
  func.func @transform_1(%arg0: i32) -> (i32, i32) {
    %c0_i32 = arith.constant 0 : i32
    %c0_i32_0 = arith.constant 0 : i32
    return %c0_i32, %arg0 : i32, i32
  }
  func.func @transform_2(%arg0: i32) -> (i32, i32) {
    %c0_i32 = arith.constant 0 : i32
    %c0_i32_0 = arith.constant 0 : i32
    %c0_i32_1 = arith.constant 0 : i32
    return %c0_i32, %c0_i32_0 : i32, i32
  }
  func.func @transform_3(%arg0: i32) -> (i32, i32) {
    %c0_i32 = arith.constant 0 : i32
    %c0_i32_0 = arith.constant 0 : i32
    %c0_i32_1 = arith.constant 0 : i32
    return %c0_i32, %c0_i32_0 : i32, i32
  }
  func.func @transform_4(%arg0: i32) -> (i32, i32) {
    %c0_i32 = arith.constant 0 : i32
    %c0_i32_0 = arith.constant 0 : i32
    %c0_i32_1 = arith.constant 0 : i32
    return %c0_i32, %c0_i32_0 : i32, i32
  }
  func.func @transform_5(%arg0: i32) -> (i32, i32) {
    %c0_i32 = arith.constant 0 : i32
    %c0_i32_0 = arith.constant 0 : i32
    %c0_i32_1 = arith.constant 0 : i32
    return %c0_i32, %c0_i32_0 : i32, i32
  }
}

</mosaic_0001>

<llo_original>
// kernel: tpu_custom_call.1
$region0: #{tpu_custom_call.1}
  #allocation0 [shape = 'u32[]', space=smem, size = 0x4, offset = 0x4, fixed_abs, tag = 'smem constant byte address 0x4 - core index']
  #allocation1 [shape = 'u32[144,128]{1,0:T(1,128)}', space=vmem, size = 0x12000, scoped, tag = 'internal scratch']
  #allocation2 [shape = 'f32[1,128]{1,0:T(1,128)}', space=vmem, size = 0x200, scoped, tag = 'scratch operand']
  #allocation3 [shape = 'f32[1,128]{1,0:T(1,128)}', space=vmem, size = 0x200, scoped, tag = 'scratch operand']
  #allocation4 [shape = 'f32[1,128]{1,0:T(1,128)}', space=vmem, size = 0x200, scoped, tag = 'scratch operand']
  %s0 = inlined_call_operand.vmem [shape: f32[144,8], index: 0, kind: input, shape index: {}]
  %s1 = inlined_call_operand.vmem [shape: s32[1,144], index: 1, kind: input, shape index: {}]
  %s2 = inlined_call_operand.vmem [shape: f32[8,1], index: 2, kind: input, shape index: {}]
  %s3 = inlined_call_operand.hbm [shape: f32[1,128], index: 3, kind: output, shape index: {0}]
  %s4 = inlined_call_operand.hbm [shape: f32[1,128], index: 4, kind: output, shape index: {1}]
  %s5 = inlined_call_operand.hbm [shape: f32[1,128], index: 5, kind: output, shape index: {2}]
  %6 = xla_tuple %s3, %s4, %s5
  %s7 = sld [smem:[#allocation0]]
  $region69: #{tpu_custom_call.1} parent=0
    _
  %s9 = ssub.s32 1, %s7
  %s10 = scalar_select 0, %s9, %s7
  $region1: #{tpu_custom_call.1} parent=0
    #allocation5 [shape = 'u8[512]{0}', space=vmem, size = 0x400, scoped, tag = 'output window, operand 0, single buffered']
    #allocation6 [shape = 's32[2]{0}', space=sflag, size = 0x8, scoped, tag = 'scoped memory for tpu_custom_call.1']
    #allocation7 [shape = 'u8[512]{0}', space=vmem, size = 0x400, scoped, tag = 'output window, operand 1, single buffered']
    #allocation8 [shape = 's32[1]{0}', space=sflag, size = 0x4, scoped, tag = 'scoped memory for tpu_custom_call.1']
    #allocation9 [shape = 'u8[512]{0}', space=vmem, size = 0x400, scoped, tag = 'output window, operand 2, single buffered']
    %11 = vsyncpa [#allocation6], 0
    %12 = vsyncpa [#allocation8], 0
    loop: start=0, step=1, limit=4
    $region2: #{tpu_custom_call.1} parent=1 // loop_pre_header
      _
    $region3: #{tpu_custom_call.1} parent=1 // loop_header
      %s14 = sphi 0, %s18
      %p15 = scmp.ge.s32.totalorder %s14, 4
      %s24 = sphi 0, %s26
      %s27 = sphi 0, %s24
      %s28 = sphi 0, %s27
      %s44 = sphi 0, %s28
      %s50 = sphi 0, %s52
      %s53 = sphi 0, %s50
      %s54 = sphi 0, %s53
      %s70 = sphi 0, %s54
      %s74 = sphi 0, %s74
      %s76 = sphi 0, %s74
      %s77 = sphi 0, %s76
      %s91 = sphi 0, %s77
      %s95 = sphi 0, %s95
      %s97 = sphi 0, %s95
      %s98 = sphi 0, %s97
      %s112 = sphi 0, %s98
      %s116 = sphi 0, %s116
      %s118 = sphi 0, %s116
      %s119 = sphi 0, %s118
      %s133 = sphi 0, %s119
      %s137 = sphi 0, %s137
      %s139 = sphi 0, %s137
      %s140 = sphi 0, %s139
      %s154 = sphi 0, %s140
    $region4: #{tpu_custom_call.1} parent=1 // loop_header_branch
      %17 = sbr.rel (%p15) target = $region8
    $region5: #{tpu_custom_call.1} parent=1 // loop_body
      %s19 = ssub.s32 %s14, 1
      %s20 = ssub.s32 %s14, 2
      %s21 = sadd.s32 %s14, 1
      %s22 = ssub.s32 %s14, %s21
      %p23 = scmp.eq.s32.totalorder %s22, 0
      %s25 = sadd.s32 %s24, 1
      %s26 = scalar_select %p23, %s24, %s25
      %p29 = pneg %p23
      %p30 = scmp.eq.s32.totalorder %s14, 1
      %p31 = por %p29, %p30
      %p32 = scmp.ne.s32.totalorder %s24, %s27
      %p33 = scmp.eq.s32.totalorder %s14, 0
      %p34 = por %p32, %p33
      %p35 = scmp.ne.s32.totalorder %s24, %s27
      %p36 = scmp.eq.s32.totalorder %s19, 1
      %p37 = por %p35, %p36
      %p38 = scmp.ne.s32.totalorder %s27, %s28
      %p39 = scmp.eq.s32.totalorder %s19, 0
      %p40 = por %p38, %p39
      %p41 = scmp.ne.s32.totalorder %s27, %s28
      %p42 = scmp.eq.s32.totalorder %s20, 1
      %p43 = por %p41, %p42
      %p45 = scmp.ne.s32.totalorder %s28, %s44
      %p46 = scmp.eq.s32.totalorder %s20, 0
      %p47 = por %p45, %p46
      %s48 = ssub.s32 %s14, %s21
      %p49 = scmp.eq.s32.totalorder %s48, 0
      %s51 = sadd.s32 %s50, 1
      %s52 = scalar_select %p49, %s50, %s51
      %p55 = pneg %p49
      %p56 = scmp.eq.s32.totalorder %s14, 1
      %p57 = por %p55, %p56
      %p58 = scmp.ne.s32.totalorder %s50, %s53
      %p59 = scmp.eq.s32.totalorder %s14, 0
      %p60 = por %p58, %p59
      %p61 = scmp.ne.s32.totalorder %s50, %s53
      %p62 = scmp.eq.s32.totalorder %s19, 1
      %p63 = por %p61, %p62
      %p64 = scmp.ne.s32.totalorder %s53, %s54
      %p65 = scmp.eq.s32.totalorder %s19, 0
      %p66 = por %p64, %p65
      %p67 = scmp.ne.s32.totalorder %s53, %s54
      %p68 = scmp.eq.s32.totalorder %s20, 1
      %p69 = por %p67, %p68
      %p71 = scmp.ne.s32.totalorder %s54, %s70
      %p72 = scmp.eq.s32.totalorder %s20, 0
      %p73 = por %p71, %p72
      %s75 = sadd.s32 %s74, 1
      %p78 = scmp.eq.s32.totalorder %s14, 1
      %p79 = scmp.ne.s32.totalorder %s74, %s76
      %p80 = scmp.eq.s32.totalorder %s14, 0
      %p81 = por %p79, %p80
      %p82 = scmp.ne.s32.totalorder %s74, %s76
      %p83 = scmp.eq.s32.totalorder %s19, 1
      %p84 = por %p82, %p83
      %p85 = scmp.ne.s32.totalorder %s76, %s77
      %p86 = scmp.eq.s32.totalorder %s19, 0
      %p87 = por %p85, %p86
      %p88 = scmp.ne.s32.totalorder %s76, %s77
      %p89 = scmp.eq.s32.totalorder %s20, 1
      %p90 = por %p88, %p89
      %p92 = scmp.ne.s32.totalorder %s77, %s91
      %p93 = scmp.eq.s32.totalorder %s20, 0
      %p94 = por %p92, %p93
      %s96 = sadd.s32 %s95, 1
      %p99 = scmp.eq.s32.totalorder %s14, 1
      %p100 = scmp.ne.s32.totalorder %s95, %s97
      %p101 = scmp.eq.s32.totalorder %s14, 0
      %p102 = por %p100, %p101
      %p103 = scmp.ne.s32.totalorder %s95, %s97
      %p104 = scmp.eq.s32.totalorder %s19, 1
      %p105 = por %p103, %p104
      %p106 = scmp.ne.s32.totalorder %s97, %s98
      %p107 = scmp.eq.s32.totalorder %s19, 0
      %p108 = por %p106, %p107
      %p109 = scmp.ne.s32.totalorder %s97, %s98
      %p110 = scmp.eq.s32.totalorder %s20, 1
      %p111 = por %p109, %p110
      %p113 = scmp.ne.s32.totalorder %s98, %s112
      %p114 = scmp.eq.s32.totalorder %s20, 0
      %p115 = por %p113, %p114
      %s117 = sadd.s32 %s116, 1
      %p120 = scmp.eq.s32.totalorder %s14, 1
      %p121 = scmp.ne.s32.totalorder %s116, %s118
      %p122 = scmp.eq.s32.totalorder %s14, 0
      %p123 = por %p121, %p122
      %p124 = scmp.ne.s32.totalorder %s116, %s118
      %p125 = scmp.eq.s32.totalorder %s19, 1
      %p126 = por %p124, %p125
      %p127 = scmp.ne.s32.totalorder %s118, %s119
      %p128 = scmp.eq.s32.totalorder %s19, 0
      %p129 = por %p127, %p128
      %p130 = scmp.ne.s32.totalorder %s118, %s119
      %p131 = scmp.eq.s32.totalorder %s20, 1
      %p132 = por %p130, %p131
      %p134 = scmp.ne.s32.totalorder %s119, %s133
      %p135 = scmp.eq.s32.totalorder %s20, 0
      %p136 = por %p134, %p135
      %s138 = sadd.s32 %s137, 1
      %p141 = scmp.eq.s32.totalorder %s14, 1
      %p142 = scmp.ne.s32.totalorder %s137, %s139
      %p143 = scmp.eq.s32.totalorder %s14, 0
      %p144 = por %p142, %p143
      %p145 = scmp.ne.s32.totalorder %s137, %s139
      %p146 = scmp.eq.s32.totalorder %s19, 1
      %p147 = por %p145, %p146
      %p148 = scmp.ne.s32.totalorder %s139, %s140
      %p149 = scmp.eq.s32.totalorder %s19, 0
      %p150 = por %p148, %p149
      %p151 = scmp.ne.s32.totalorder %s139, %s140
      %p152 = scmp.eq.s32.totalorder %s20, 1
      %p153 = por %p151, %p152
      %p155 = scmp.ne.s32.totalorder %s140, %s154
      %p156 = scmp.eq.s32.totalorder %s20, 0
      %p157 = por %p155, %p156
      %p158 = scmp.le.s32.totalorder 1, %s14
      %p159 = scmp.lt.s32.totalorder %s14, 3
      %p160 = pnand %p158, %p159
      %p161 = pneg %p160
      // Predicated region
      $region9: #{tpu_custom_call.1} parent=5 // pred_check
        _
      $region10: #{tpu_custom_call.1} parent=5 // pred_check_branch
        %163 = sbr.rel (%p160) target = $region12
      $region11: #{tpu_custom_call.1} parent=5 // pred_region
        %s164 = ssub.s32 %s14, 1
        // Predicated region
        $region13: #{tpu_custom_call.1} parent=11 // pred_check
          %p165 = pneg %p87
        $region14: #{tpu_custom_call.1} parent=11 // pred_check_branch
          %167 = sbr.rel (%p165) target = $region16
        $region15: #{tpu_custom_call.1} parent=11 // pred_region
          _
        $region16: #{tpu_custom_call.1} parent=11 // pred_fallthru
          _
      $region12: #{tpu_custom_call.1} parent=5 // pred_fallthru
        _
      %p168 = scmp.lt.s32.totalorder %s14, 2
      // Predicated region
      $region17: #{tpu_custom_call.1} parent=5 // pred_check
        %p169 = pneg %p168
      $region18: #{tpu_custom_call.1} parent=5 // pred_check_branch
        %171 = sbr.rel (%p169) target = $region20
      $region19: #{tpu_custom_call.1} parent=5 // pred_region
        // Predicated region
        $region21: #{tpu_custom_call.1} parent=19 // pred_check
          %p172 = pneg %p34
        $region22: #{tpu_custom_call.1} parent=19 // pred_check_branch
          %174 = sbr.rel (%p172) target = $region24
        $region23: #{tpu_custom_call.1} parent=19 // pred_region
          %s175 = smul.u32 16, %s14
          %s176 = ssub.s32 18, %s175
          %p177 = scmp.lt.s32.totalorder %s176, 16
          %s178 = scalar_select %p177, %s176, 16
          %s179 = smul.u32 128, %s178
          %p180 = scmp.lt.s32.totalorder %s175, 17
          %s181 = scalar_select %p180, %s175, 17
          %s182 = smul.addr %s181, 8
          %s183 = scalar_lea.vmem %s0, %s182
          %s184 = smul.u32 16, %s14
          %s185 = ssub.s32 18, %s184
          %p186 = scmp.lt.s32.totalorder %s185, 16
          %s187 = scalar_select %p186, %s185, 16
          %s188 = smul.u32 128, %s187
        $region24: #{tpu_custom_call.1} parent=19 // pred_fallthru
          _
        // Predicated region
        $region25: #{tpu_custom_call.1} parent=19 // pred_check
          %p189 = pneg %p60
        $region26: #{tpu_custom_call.1} parent=19 // pred_check_branch
          %191 = sbr.rel (%p189) target = $region28
        $region27: #{tpu_custom_call.1} parent=19 // pred_region
          %p192 = scmp.lt.s32.totalorder %s14, 1
          %s193 = scalar_select %p192, %s14, 1
          %s194 = scalar_lea.vmem %s1, %s193
        $region28: #{tpu_custom_call.1} parent=19 // pred_fallthru
          _
      $region20: #{tpu_custom_call.1} parent=5 // pred_fallthru
        _
      %p195 = scmp.le.s32.totalorder 1, %s14
      %p196 = scmp.lt.s32.totalorder %s14, 3
      %p197 = pnand %p195, %p196
      %p198 = pneg %p197
      // Predicated region
      $region29: #{tpu_custom_call.1} parent=5 // pred_check
        _
      $region30: #{tpu_custom_call.1} parent=5 // pred_check_branch
        %200 = sbr.rel (%p197) target = $region32
      $region31: #{tpu_custom_call.1} parent=5 // pred_region
        %s201 = ssub.s32 %s14, 1
        %s202 = smul.u32 16, %s19
        %s203 = ssub.s32 18, %s202
        %p204 = scmp.lt.s32.totalorder %s203, 16
        %s205 = scalar_select %p204, %s203, 16
        %s206 = smul.u32 128, %s205
        %p207 = scmp.lt.s32.totalorder %s202, 17
        %s208 = scalar_select %p207, %s202, 17
        %s209 = smul.addr %s208, 8
        %s210 = scalar_lea.vmem %s0, %s209
        %p211 = pneg %p40
        %p212 = pneg %p37
        %p213 = scmp.lt.s32.totalorder %s19, 1
        %s214 = scalar_select %p213, %s19, 1
        %s215 = scalar_lea.vmem %s1, %s214
        %p216 = pneg %p66
        %p217 = pneg %p63
        %p218 = pneg %p87
        %p219 = pneg %p84
        %p220 = pneg %p108
        %p221 = pneg %p105
        %p222 = pneg %p129
        %p223 = pneg %p126
        %p224 = pneg %p150
        %p225 = pneg %p147
        %s226 = smul.u32 16, %s19
        %s227 = ssub.s32 18, %s226
        %p228 = scmp.lt.s32.totalorder %s227, 16
        %s229 = scalar_select %p228, %s227, 16
        %s230 = smul.u32 128, %s229
        %p231 = scmp.lt.s32.totalorder %s226, 17
        %s232 = scalar_select %p231, %s226, 17
        %s233 = smul.addr %s232, 8
        %s234 = scalar_lea.vmem %s0, %s233
        %s235 = smul.u32 16, %s19
        %s236 = ssub.s32 18, %s235
        %p237 = scmp.lt.s32.totalorder %s236, 16
        %s238 = scalar_select %p237, %s236, 16
        %s239 = smul.u32 128, %s238
        %p240 = scmp.lt.s32.totalorder %s19, 1
        %s241 = scalar_select %p240, %s19, 1
        %s242 = scalar_lea.vmem %s1, %s241
        %p243 = scmp.eq.s32.totalorder %s19, 0
        // Predicated region
        $region33: #{tpu_custom_call.1} parent=31 // pred_check
          %p244 = pneg %p243
        $region34: #{tpu_custom_call.1} parent=31 // pred_check_branch
          %246 = sbr.rel (%p244) target = $region36
        $region35: #{tpu_custom_call.1} parent=31 // pred_region
          %247 = vst [vmem:[#allocation2] sm:$0x1] 0.0
          %248 = vst [vmem:[#allocation3] sm:$0x1] 0.0
          %249 = vst [vmem:[#allocation4] sm:$0x1] 0.0
        $region36: #{tpu_custom_call.1} parent=31 // pred_fallthru
          _
        %v250 = vld [vmem:[%s234] sm:$0xff]
        %v251 = vld [vmem:[%s234 + $0x8] sm:$0xff]
        %v252 = vld [vmem:[%s234 + $0x10] sm:$0xff]
        %v253 = vld [vmem:[%s234 + $0x18] sm:$0xff]
        %v254 = vld [vmem:[%s234 + $0x20] sm:$0xff]
        %v255 = vld [vmem:[%s234 + $0x28] sm:$0xff]
        %v256 = vld [vmem:[%s234 + $0x30] sm:$0xff]
        %v257 = vld [vmem:[%s234 + $0x38] sm:$0xff]
        %v258 = vld [vmem:[%s234 + $0x40] sm:$0xff]
        %v259 = vld [vmem:[%s234 + $0x48] sm:$0xff]
        %v260 = vld [vmem:[%s234 + $0x50] sm:$0xff]
        %v261 = vld [vmem:[%s234 + $0x58] sm:$0xff]
        %v262 = vld [vmem:[%s234 + $0x60] sm:$0xff]
        %v263 = vld [vmem:[%s234 + $0x68] sm:$0xff]
        %v264 = vld [vmem:[%s234 + $0x70] sm:$0xff]
        %v265 = vld [vmem:[%s234 + $0x78] sm:$0xff]
        %266 = vxpose.xlu0.b32.start [1/16] %v250, 128
        %267 = vxpose.xlu0.b32.cont [2/16] %v251, 128
        %268 = vxpose.xlu0.b32.cont [3/16] %v252, 128
        %269 = vxpose.xlu0.b32.cont [4/16] %v253, 128
        %270 = vxpose.xlu0.b32.cont [5/16] %v254, 128
        %271 = vxpose.xlu0.b32.cont [6/16] %v255, 128
        %272 = vxpose.xlu0.b32.cont [7/16] %v256, 128
        %273 = vxpose.xlu0.b32.cont [8/16] %v257, 128
        %274 = vxpose.xlu0.b32.cont [9/16] %v258, 128
        %275 = vxpose.xlu0.b32.cont [10/16] %v259, 128
        %276 = vxpose.xlu0.b32.cont [11/16] %v260, 128
        %277 = vxpose.xlu0.b32.cont [12/16] %v261, 128
        %278 = vxpose.xlu0.b32.cont [13/16] %v262, 128
        %279 = vxpose.xlu0.b32.cont [14/16] %v263, 128
        %280 = vxpose.xlu0.b32.cont [15/16] %v264, 128
        %281 = vxpose.xlu0.b32.end [16/16] %v265, 128
        %v282 = vpop.trf.xlu0
        %v283 = vpop.trf.xlu0
        %v284 = vpop.trf.xlu0
        %v285 = vpop.trf.xlu0
        %v286 = vpop.trf.xlu0
        %v287 = vpop.trf.xlu0
        %v288 = vpop.trf.xlu0
        %v289 = vpop.trf.xlu0
        %v290 = vpop.trf.xlu0
        %v291 = vpop.trf.xlu0
        %v292 = vpop.trf.xlu0
        %v293 = vpop.trf.xlu0
        %v294 = vpop.trf.xlu0
        %v295 = vpop.trf.xlu0
        %v296 = vpop.trf.xlu0
        %v297 = vpop.trf.xlu0
        %v298 = vld [vmem:[%s242] sm:$0x1]
        %v299 = vld [vmem:[%s2] sm:$0xff]
        %v300 = vlaneseq
        %v301 = vshrl.u32 %v300, 7
        %v302 = vlaneseq
        %v303 = vshrl.u32 %v302, 7
        %v304 = vsub.s32 0, %v303
        %v305 = vrot.slane %v298, %v304
        %vm306 = vcmp.eq.s32.totalorder %v301, %v305
        %v307 = vsel %vm306, 1, 0
        %v308 = vcvt.s32.f32 %v307
        %v309 = vrot.slane %v282, 4
        %v310 = vmax.f32 %v282, %v309
        %v311 = vrot.slane %v310, 2
        %v312 = vmax.f32 %v310, %v311
        %v313 = vrot.slane %v312, 1
        %v314 = vmax.f32 %v312, %v313
        %v315 = vsub.f32 %v282, %v314
        %v316 = vmul.f32 %v315, 1.442695
        %v317 = vpow.pop %v316
        %v318 = vrot.slane %v317, 4
        %v319 = vadd.f32 %v317, %v318
        %v320 = vrot.slane %v319, 2
        %v321 = vadd.f32 %v319, %v320
        %v322 = vrot.slane %v321, 1
        %v323 = vadd.f32 %v321, %v322
        %v324 = vlog2.pop %v323
        %v325 = vmul.f32 %v324, 0.6931472
        %v326 = vadd.f32 %v314, %v325
        %v327 = vmul.f32 %v282, %v308
        %v328 = vrot.slane %v327, 4
        %v329 = vadd.f32 %v327, %v328
        %v330 = vrot.slane %v329, 2
        %v331 = vadd.f32 %v329, %v330
        %v332 = vrot.slane %v331, 1
        %v333 = vadd.f32 %v331, %v332
        %335 = vset.pattern.permute.xlu0 0
        %336 = vperm.xlu0 %335, %v299
        %v337 = vpop.permute.xlu0 %336
        %v339 = vmul.f32 %v337, %v308
        %v340 = vrot.slane %v339, 4
        %v341 = vadd.f32 %v339, %v340
        %v342 = vrot.slane %v341, 2
        %v343 = vadd.f32 %v341, %v342
        %v344 = vrot.slane %v343, 1
        %v345 = vadd.f32 %v343, %v344
        %v346 = vsub.f32 %v326, %v333
        %v347 = vmul.f32 %v317, %v308
        %v348 = vrot.slane %v347, 4
        %v349 = vadd.f32 %v347, %v348
        %v350 = vrot.slane %v349, 2
        %v351 = vadd.f32 %v349, %v350
        %v352 = vrot.slane %v351, 1
        %v353 = vadd.f32 %v351, %v352
        %v354 = vrcp.pop %v323
        %v355 = vmul.f32 %v353, %v354
        %v356 = vsub.f32 1.0, %v355
        %v357 = vmax.f32 %v356, 0.0
        %v358 = vmul.f32 %v357, %v357
        %v359 = vmul.f32 %v345, %v346
        %v360 = vlaneseq
        %v361 = vand.u32 %v360, 127
        %s362 = smul.u32 %s19, 128
        %v363 = vstv %s362
        %v364 = vadd.s32 %v363, %v361
        %vm365 = vcmp.lt.s32.totalorder %v364, 144
        %v366 = vsel %vm365, %v359, 0.0
        %v367 = vsel %vm365, %v345, 0.0
        %v368 = vsel %vm365, %v358, 0.0
        %v369 = vld [vmem:[#allocation2] sm:$0x1]
        %v370 = vadd.f32 %v369, %v366
        %371 = vst [vmem:[#allocation2] sm:$0x1] %v370
        %v372 = vld [vmem:[#allocation3] sm:$0x1]
        %v373 = vadd.f32 %v372, %v367
        %374 = vst [vmem:[#allocation3] sm:$0x1] %v373
        %v375 = vld [vmem:[#allocation4] sm:$0x1]
        %v376 = vadd.f32 %v375, %v368
        %377 = vst [vmem:[#allocation4] sm:$0x1] %v376
        %p378 = scmp.eq.s32.totalorder %s19, 1
        // Predicated region
        $region37: #{tpu_custom_call.1} parent=31 // pred_check
          %p379 = pneg %p378
        $region38: #{tpu_custom_call.1} parent=31 // pred_check_branch
          %381 = sbr.rel (%p379) target = $region40
        $region39: #{tpu_custom_call.1} parent=31 // pred_region
          %vm382 = vcmp.eq.s32.totalorder %v361, 0
          %v383 = vld [vmem:[#allocation2] sm:$0x1]
          %vm384 = vcmask 1040384
          %v385 = vsel %vm384, %v383, 0.0
          %386 = vadd.xlane.f32.xlu0 %v385
          %v387 = vpop.xlane.xlu0 %386
          %v388 = vrot.slane %v387, 4
          %v389 = vadd.f32 %v387, %v388
          %v390 = vrot.slane %v389, 2
          %v391 = vadd.f32 %v389, %v390
          %v392 = vrot.slane %v391, 1
          %v393 = vadd.f32 %v391, %v392
          %s394 = vtos %v393
          %v395 = vstv %s394
          %v396 = vsel %vm382, %v395, 0.0
          %397 = vst [vmem:[#allocation5] sm:$0x1] %v396
          %v398 = vld [vmem:[#allocation3] sm:$0x1]
          %v399 = vsel %vm384, %v398, 0.0
          %400 = vadd.xlane.f32.xlu0 %v399
          %v401 = vpop.xlane.xlu0 %400
          %v402 = vrot.slane %v401, 4
          %v403 = vadd.f32 %v401, %v402
          %v404 = vrot.slane %v403, 2
          %v405 = vadd.f32 %v403, %v404
          %v406 = vrot.slane %v405, 1
          %v407 = vadd.f32 %v405, %v406
          %s408 = vtos %v407
          %v409 = vstv %s408
          %v410 = vsel %vm382, %v409, 0.0
          %411 = vst [vmem:[#allocation7] sm:$0x1] %v410
          %v412 = vld [vmem:[#allocation4] sm:$0x1]
          %v413 = vsel %vm384, %v412, 0.0
          %414 = vadd.xlane.f32.xlu0 %v413
          %v415 = vpop.xlane.xlu0 %414
          %v416 = vrot.slane %v415, 4
          %v417 = vadd.f32 %v415, %v416
          %v418 = vrot.slane %v417, 2
          %v419 = vadd.f32 %v417, %v418
          %v420 = vrot.slane %v419, 1
          %v421 = vadd.f32 %v419, %v420
          %s422 = vtos %v421
          %v423 = vstv %s422
          %v424 = vsel %vm382, %v423, 0.0
          %425 = vst [vmem:[#allocation9] sm:$0x1] %v424
        $region40: #{tpu_custom_call.1} parent=31 // pred_fallthru
          _
        // Predicated region
        $region41: #{tpu_custom_call.1} parent=31 // pred_check
          %p426 = pneg %p105
        $region42: #{tpu_custom_call.1} parent=31 // pred_check_branch
          %428 = sbr.rel (%p426) target = $region44
        $region43: #{tpu_custom_call.1} parent=31 // pred_region
          %s430 = ssub.s32 16, 16
          %431 = vsyncadd [#allocation6], %s430
          %s433 = sshll.u32 [#allocation5], 4
          %s434 = int_to_ptr.vmem [resolvable:$true] %s433
          %436 = dma.vmem_to_hbm [thread:$0]  %s434, 16, %s3, [#allocation6]
        $region44: #{tpu_custom_call.1} parent=31 // pred_fallthru
          _
        // Predicated region
        $region45: #{tpu_custom_call.1} parent=31 // pred_check
          %p437 = pneg %p126
        $region46: #{tpu_custom_call.1} parent=31 // pred_check_branch
          %439 = sbr.rel (%p437) target = $region48
        $region47: #{tpu_custom_call.1} parent=31 // pred_region
          %s441 = ssub.s32 16, 16
          %442 = vsyncadd [#allocation8], %s441
          %s444 = sshll.u32 [#allocation7], 4
          %s445 = int_to_ptr.vmem [resolvable:$true] %s444
          %447 = dma.vmem_to_hbm [thread:$0]  %s445, 16, %s4, [#allocation8]
        $region48: #{tpu_custom_call.1} parent=31 // pred_fallthru
          _
        // Predicated region
        $region49: #{tpu_custom_call.1} parent=31 // pred_check
          %p448 = pneg %p147
        $region50: #{tpu_custom_call.1} parent=31 // pred_check_branch
          %450 = sbr.rel (%p448) target = $region52
        $region51: #{tpu_custom_call.1} parent=31 // pred_region
          %s452 = ssub.s32 16, 16
          %453 = vsyncadd [#allocation8], %s452
          %s455 = sshll.u32 [#allocation9], 4
          %s456 = int_to_ptr.vmem [resolvable:$true] %s455
          %458 = dma.vmem_to_hbm [thread:$0]  %s456, 16, %s5, [#allocation8]
        $region52: #{tpu_custom_call.1} parent=31 // pred_fallthru
          _
        // Predicated region
        $region53: #{tpu_custom_call.1} parent=31 // pred_check
          %p459 = pneg %p105
        $region54: #{tpu_custom_call.1} parent=31 // pred_check_branch
          %461 = sbr.rel (%p459) target = $region56
        $region55: #{tpu_custom_call.1} parent=31 // pred_region
          %462 = dma.done [#allocation6], 16
        $region56: #{tpu_custom_call.1} parent=31 // pred_fallthru
          _
        // Predicated region
        $region57: #{tpu_custom_call.1} parent=31 // pred_check
          %p463 = pneg %p126
        $region58: #{tpu_custom_call.1} parent=31 // pred_check_branch
          %465 = sbr.rel (%p463) target = $region60
        $region59: #{tpu_custom_call.1} parent=31 // pred_region
          %466 = dma.done [#allocation8], 16
        $region60: #{tpu_custom_call.1} parent=31 // pred_fallthru
          _
        // Predicated region
        $region61: #{tpu_custom_call.1} parent=31 // pred_check
          %p467 = pneg %p147
        $region62: #{tpu_custom_call.1} parent=31 // pred_check_branch
          %469 = sbr.rel (%p467) target = $region64
        $region63: #{tpu_custom_call.1} parent=31 // pred_region
          %470 = dma.done [#allocation8], 16
        $region64: #{tpu_custom_call.1} parent=31 // pred_fallthru
          _
      $region32: #{tpu_custom_call.1} parent=5 // pred_fallthru
        _
      %p471 = scmp.le.s32.totalorder 2, %s14
      // Predicated region
      $region65: #{tpu_custom_call.1} parent=5 // pred_check
        %p472 = pneg %p471
      $region66: #{tpu_custom_call.1} parent=5 // pred_check_branch
        %474 = sbr.rel (%p472) target = $region68
      $region67: #{tpu_custom_call.1} parent=5 // pred_region
        %s475 = ssub.s32 %s14, 2
      $region68: #{tpu_custom_call.1} parent=5 // pred_fallthru
        _
    $region6: #{tpu_custom_call.1} parent=1 // loop_footer
      %s18 = sadd.s32 1, %s14
    $region7: #{tpu_custom_call.1} parent=1 // loop_footer_branch
      %13 = sbr.rel target = $region3
    $region8: #{tpu_custom_call.1} parent=1 // loop_exit
      _
    %476 = vsyncpa [#allocation6], 1
    %s477 = scalar_lea.sflag [#allocation6], 1
    %478 = vsyncpa %s477, 1
    %479 = vsyncpa [#allocation8], 1

</llo_original>
